<compile_context>
chip_gen: v5e
topology: v5e:2x2
jax: 0.10.0
libtpu: 0.0.40
codegen_flags: <defaults>
</compile_context>

<pallas_src>
import functools

import jax
import jax.numpy as jnp
import numpy as np
from jax.experimental import pallas as pl
from jax.experimental.pallas import tpu as pltpu


def _residual_kernel(x_ref, w1_ref, w2_ref, mask_ref, o_ref, patch_ref,
                     *, H, W, C, BT):
    """ResidualLayer forward for BT images per grid step.

    x_ref    : (BT, C, L)  lane-dense images, x[b, c, i*W + j] == x_nchw[b, c, i, j]
    w1_ref   : (C, 9*C)    3x3 conv weights, column index = (kh*3 + kw)*C + cin
    w2_ref   : (C, C)      1x1 conv weights, [cout, cin]
    mask_ref : (9, L)      per-tap border masks (1.0 where the tap is in-bounds)
    o_ref    : (BT, C, L)
    patch_ref: (9*C, L)    VMEM scratch holding the im2col patch matrix
    """
    L = H * W
    for b in range(BT):                       # static (unrolled) batch loop
        x = x_ref[b]                          # (C, L) f32, lane-dense

        # Build the im2col patch matrix: XLU lane rotation per tap + border
        # mask, written straight into the VMEM scratch slab (sublane offset
        # idx*C is 8-aligned for C=32; L is 128-aligned for 16x16 images).
        for kh in range(3):
            for kw in range(3):
                idx = kh * 3 + kw
                off = (kh - 1) * W + (kw - 1)     # tap[m] = x[m + off]
                if off == 0:
                    tap = x                       # center tap: no roll, no mask
                else:
                    # jnp.roll semantics: roll(x, s)[m] == x[m - s], so a
                    # shift of (-off) mod L gives tap[m] = x[(m + off) mod L];
                    # the circular wrap lands exactly on masked border taps.
                    tap = pltpu.roll(x, (-off) % L, axis=1)
                    tap = tap * mask_ref[idx:idx + 1, :]
                patch_ref[idx * C:(idx + 1) * C, :] = tap

        # conv3x3 as ONE fused K = 9*C matmul on the MXU, f32 accumulate.
        h = jnp.dot(w1_ref[...], patch_ref[...],
                    preferred_element_type=jnp.float32)
        h = jnp.maximum(h, 0.0)                   # ReLU, (C, L)
        # conv1x1.
        y = jnp.dot(w2_ref[...], h, preferred_element_type=jnp.float32)

        # Residual add + lane-dense (unmasked for L % 128 == 0) store.
        o_ref[b] = (x + y).astype(o_ref.dtype)


@jax.jit
def residual_layer_pallas(x_nchw, w3x3, w1x1):
    """x_nchw: (N, C, H, W) float32
    w3x3  : (Cout, Cin, 3, 3)  PyTorch OIHW conv weight, bias-free
    w1x1  : (Cout, Cout, 1, 1)
    Requires Cin == Cout (implied by `input + resblock(input)`).
    """
    N, C, H, W = x_nchw.shape
    assert w3x3.shape == (C, C, 3, 3) and w1x1.shape[:2] == (C, C)
    L = H * W

    # Free contiguous view: NCHW -> (N, C, H*W). No transposes, no padding.
    # (Fully unmasked lane stores when L % 128 == 0; other L are still
    #  correct, just with masked partial stores.)
    x_flat = x_nchw.reshape(N, C, L).astype(jnp.float32)

    # (Cout, Cin, 3, 3) -> (Cout, kh, kw, Cin) -> (Cout, 9*Cin); column index
    # (kh*3 + kw)*C + cin matches the patch-matrix row order in the kernel.
    w1_t = jnp.transpose(w3x3, (0, 2, 3, 1)).reshape(C, 9 * C).astype(jnp.float32)
    # (Cout, Cin, 1, 1) -> (Cout, Cin)
    w2_t = w1x1[:, :, 0, 0].astype(jnp.float32)

    # Per-tap border masks (constant, tiny): zero out the positions where the
    # circular lane-roll would wrap across a row boundary (kw taps) or across
    # the top/bottom image border (kh taps).
    ii = np.arange(L) // W
    jj = np.arange(L) % W
    masks_np = np.ones((9, L), np.float32)
    for kh in range(3):
        for kw in range(3):
            m = np.ones(L, np.float32)
            if kh == 0:
                m *= (ii > 0)
            if kh == 2:
                m *= (ii < H - 1)
            if kw == 0:
                m *= (jj > 0)
            if kw == 2:
                m *= (jj < W - 1)
            masks_np[kh * 3 + kw] = m
    masks = jnp.asarray(masks_np)

    # Batch tile: amortize per-grid-step overhead, but keep >= 2 grid steps so
    # both v7x TensorCores get work (v5e/v6e have 1 TC, so this is harmless).
    bt = 1
    for cand in (8, 4, 2):
        if N % cand == 0 and N // cand >= 2:
            bt = cand
            break

    kernel = functools.partial(_residual_kernel, H=H, W=W, C=C, BT=bt)

    flops = 2 * N * L * (9 * C * C + C * C)
    bytes_accessed = 2 * N * C * L * 4 + (9 * C * C + C * C + 9 * L) * 4

    out_flat = pl.pallas_call(
        kernel,
        out_shape=jax.ShapeDtypeStruct((N, C, L), jnp.float32),
        grid_spec=pltpu.PrefetchScalarGridSpec(
            num_scalar_prefetch=0,
            grid=(N // bt,),
            in_specs=[
                pl.BlockSpec((bt, C, L), lambda b: (b, 0, 0)),
                pl.BlockSpec((C, 9 * C), lambda b: (0, 0)),
                pl.BlockSpec((C, C), lambda b: (0, 0)),
                pl.BlockSpec((9, L), lambda b: (0, 0)),
            ],
            out_specs=pl.BlockSpec((bt, C, L), lambda b: (b, 0, 0)),
            scratch_shapes=[pltpu.VMEM((9 * C, L), jnp.float32)],
        ),
        compiler_params=pltpu.CompilerParams(
            dimension_semantics=("parallel",)),
        cost_estimate=pl.CostEstimate(
            flops=flops, transcendentals=0, bytes_accessed=bytes_accessed),
    )(x_flat, w1_t, w2_t, masks)

    # Free view back to NCHW.
    return out_flat.reshape(N, C, H, W)


def _reference(x_nchw, w3x3, w1x1):
    """Pure-JAX reference (NCHW, mirrors PyTorch semantics)."""
    y = jax.lax.conv_general_dilated(
        x_nchw, w3x3, window_strides=(1, 1), padding=((1, 1), (1, 1)),
        dimension_numbers=("NCHW", "OIHW", "NCHW"))
    y = jnp.maximum(y, 0.0)
    y = jax.lax.conv_general_dilated(
        y, w1x1, window_strides=(1, 1), padding=((0, 0), (0, 0)),
        dimension_numbers=("NCHW", "OIHW", "NCHW"))
    return x_nchw + y


if __name__ == "__main__":
    key = jax.random.PRNGKey(0)
    N, C, H, W = 2, 32, 16, 16  # in_channels == out_channels == 32

    k_x, k_w1, k_w2 = jax.random.split(key, 3)
    x = jax.random.normal(k_x, (N, C, H, W), dtype=jnp.float32)
    # Deterministic synthetic conv weights (PyTorch OIHW layout, no bias).
    w3x3 = jax.random.normal(k_w1, (C, C, 3, 3), dtype=jnp.float32) * 0.05
    w1x1 = jax.random.normal(k_w2, (C, C, 1, 1), dtype=jnp.float32) * 0.05

    out = jax.block_until_ready(residual_layer_pallas(x, w3x3, w1x1))
    ref = jax.block_until_ready(_reference(x, w3x3, w1x1))
    np.testing.assert_allclose(np.asarray(out), np.asarray(ref),
                               rtol=1e-4, atol=1e-4)
    print("KERNEL_OK")
</pallas_src>

<mosaic_0001>
module attributes {stable_mosaic.version = 11 : i64} {
  func.func @_residual_kernel(%arg0: i32, %arg1: memref<1x32x256xf32, #tpu.memory_space<vmem>>, %arg2: memref<32x288xf32, #tpu.memory_space<vmem>>, %arg3: memref<32x32xf32, #tpu.memory_space<vmem>>, %arg4: memref<9x256xf32, #tpu.memory_space<vmem>>, %arg5: memref<1x32x256xf32, #tpu.memory_space<vmem>>, %arg6: memref<288x256xf32, #tpu.memory_space<vmem>>) attributes {dimension_semantics = [#tpu.dimension_semantics<parallel>], iteration_bounds = array<i64: 2>, scalar_prefetch = 0 : i64, scratch_operands = 1 : i64, tpu.core_type = #tpu.core_type<tc>, window_params = [{transform_indices = @transform_0, window_bounds = array<i64: 1, 32, 256>}, {pipeline_mode = #tpu.pipeline_mode<synchronous>, transform_indices = @transform_1, window_bounds = array<i64: 32, 288>}, {pipeline_mode = #tpu.pipeline_mode<synchronous>, transform_indices = @transform_2, window_bounds = array<i64: 32, 32>}, {pipeline_mode = #tpu.pipeline_mode<synchronous>, transform_indices = @transform_3, window_bounds = array<i64: 9, 256>}, {transform_indices = @transform_4, window_bounds = array<i64: 1, 32, 256>}]} {
    %c0 = arith.constant 0 : index
    %c0_0 = arith.constant 0 : index
    %c0_1 = arith.constant 0 : index
    %0 = vector.load %arg1[%c0, %c0_0, %c0_1] : memref<1x32x256xf32, #tpu.memory_space<vmem>>, vector<1x32x256xf32>
    %1 = vector.shape_cast %0 : vector<1x32x256xf32> to vector<32x256xf32>
    %c17_i32 = arith.constant 17 : i32
    %2 = tpu.dynamic_rotate %1 by %c17_i32 dim 1 : vector<32x256xf32>, i32 -> vector<32x256xf32>
    %c0_2 = arith.constant 0 : index
    %c0_3 = arith.constant 0 : index
    %3 = vector.load %arg4[%c0_2, %c0_3] : memref<9x256xf32, #tpu.memory_space<vmem>>, vector<1x256xf32>
    %4 = vector.broadcast %3 : vector<1x256xf32> to vector<32x256xf32>
    %5 = arith.mulf %2, %4 : vector<32x256xf32>
    %c0_4 = arith.constant 0 : index
    %c0_5 = arith.constant 0 : index
    %6 = vector.load %arg6[%c0_4, %c0_5] : memref<288x256xf32, #tpu.memory_space<vmem>>, vector<32x256xf32>
    tpu.vector_store %arg6[%c0_4, %c0_5], %5 {strides = array<i32>} : memref<288x256xf32, #tpu.memory_space<vmem>>, vector<32x256xf32>,
    %c16_i32 = arith.constant 16 : i32
    %7 = tpu.dynamic_rotate %1 by %c16_i32 dim 1 : vector<32x256xf32>, i32 -> vector<32x256xf32>
    %c1 = arith.constant 1 : index
    %c0_6 = arith.constant 0 : index
    %8 = vector.load %arg4[%c1, %c0_6] : memref<9x256xf32, #tpu.memory_space<vmem>>, vector<1x256xf32>
    %9 = vector.broadcast %8 : vector<1x256xf32> to vector<32x256xf32>
    %10 = arith.mulf %7, %9 : vector<32x256xf32>
    %c32 = arith.constant 32 : index
    %c0_7 = arith.constant 0 : index
    %11 = vector.load %arg6[%c32, %c0_7] : memref<288x256xf32, #tpu.memory_space<vmem>>, vector<32x256xf32>
    tpu.vector_store %arg6[%c32, %c0_7], %10 {strides = array<i32>} : memref<288x256xf32, #tpu.memory_space<vmem>>, vector<32x256xf32>,
    %c15_i32 = arith.constant 15 : i32
    %12 = tpu.dynamic_rotate %1 by %c15_i32 dim 1 : vector<32x256xf32>, i32 -> vector<32x256xf32>
    %c2 = arith.constant 2 : index
    %c0_8 = arith.constant 0 : index
    %13 = vector.load %arg4[%c2, %c0_8] : memref<9x256xf32, #tpu.memory_space<vmem>>, vector<1x256xf32>
    %14 = vector.broadcast %13 : vector<1x256xf32> to vector<32x256xf32>
    %15 = arith.mulf %12, %14 : vector<32x256xf32>
    %c64 = arith.constant 64 : index
    %c0_9 = arith.constant 0 : index
    %16 = vector.load %arg6[%c64, %c0_9] : memref<288x256xf32, #tpu.memory_space<vmem>>, vector<32x256xf32>
    tpu.vector_store %arg6[%c64, %c0_9], %15 {strides = array<i32>} : memref<288x256xf32, #tpu.memory_space<vmem>>, vector<32x256xf32>,
    %c1_i32 = arith.constant 1 : i32
    %17 = tpu.dynamic_rotate %1 by %c1_i32 dim 1 : vector<32x256xf32>, i32 -> vector<32x256xf32>
    %c3 = arith.constant 3 : index
    %c0_10 = arith.constant 0 : index
    %18 = vector.load %arg4[%c3, %c0_10] : memref<9x256xf32, #tpu.memory_space<vmem>>, vector<1x256xf32>
    %19 = vector.broadcast %18 : vector<1x256xf32> to vector<32x256xf32>
    %20 = arith.mulf %17, %19 : vector<32x256xf32>
    %c96 = arith.constant 96 : index
    %c0_11 = arith.constant 0 : index
    %21 = vector.load %arg6[%c96, %c0_11] : memref<288x256xf32, #tpu.memory_space<vmem>>, vector<32x256xf32>
    tpu.vector_store %arg6[%c96, %c0_11], %20 {strides = array<i32>} : memref<288x256xf32, #tpu.memory_space<vmem>>, vector<32x256xf32>,
    %c128 = arith.constant 128 : index
    %c0_12 = arith.constant 0 : index
    %22 = vector.load %arg6[%c128, %c0_12] : memref<288x256xf32, #tpu.memory_space<vmem>>, vector<32x256xf32>
    tpu.vector_store %arg6[%c128, %c0_12], %1 {strides = array<i32>} : memref<288x256xf32, #tpu.memory_space<vmem>>, vector<32x256xf32>,
    %c255_i32 = arith.constant 255 : i32
    %23 = tpu.dynamic_rotate %1 by %c255_i32 dim 1 : vector<32x256xf32>, i32 -> vector<32x256xf32>
    %c5 = arith.constant 5 : index
    %c0_13 = arith.constant 0 : index
    %24 = vector.load %arg4[%c5, %c0_13] : memref<9x256xf32, #tpu.memory_space<vmem>>, vector<1x256xf32>
    %25 = vector.broadcast %24 : vector<1x256xf32> to vector<32x256xf32>
    %26 = arith.mulf %23, %25 : vector<32x256xf32>
    %c160 = arith.constant 160 : index
    %c0_14 = arith.constant 0 : index
    %27 = vector.load %arg6[%c160, %c0_14] : memref<288x256xf32, #tpu.memory_space<vmem>>, vector<32x256xf32>
    tpu.vector_store %arg6[%c160, %c0_14], %26 {strides = array<i32>} : memref<288x256xf32, #tpu.memory_space<vmem>>, vector<32x256xf32>,
    %c241_i32 = arith.constant 241 : i32
    %28 = tpu.dynamic_rotate %1 by %c241_i32 dim 1 : vector<32x256xf32>, i32 -> vector<32x256xf32>
    %c6 = arith.constant 6 : index
    %c0_15 = arith.constant 0 : index
    %29 = vector.load %arg4[%c6, %c0_15] : memref<9x256xf32, #tpu.memory_space<vmem>>, vector<1x256xf32>
    %30 = vector.broadcast %29 : vector<1x256xf32> to vector<32x256xf32>
    %31 = arith.mulf %28, %30 : vector<32x256xf32>
    %c192 = arith.constant 192 : index
    %c0_16 = arith.constant 0 : index
    %32 = vector.load %arg6[%c192, %c0_16] : memref<288x256xf32, #tpu.memory_space<vmem>>, vector<32x256xf32>
    tpu.vector_store %arg6[%c192, %c0_16], %31 {strides = array<i32>} : memref<288x256xf32, #tpu.memory_space<vmem>>, vector<32x256xf32>,
    %c240_i32 = arith.constant 240 : i32
    %33 = tpu.dynamic_rotate %1 by %c240_i32 dim 1 : vector<32x256xf32>, i32 -> vector<32x256xf32>
    %c7 = arith.constant 7 : index
    %c0_17 = arith.constant 0 : index
    %34 = vector.load %arg4[%c7, %c0_17] : memref<9x256xf32, #tpu.memory_space<vmem>>, vector<1x256xf32>
    %35 = vector.broadcast %34 : vector<1x256xf32> to vector<32x256xf32>
    %36 = arith.mulf %33, %35 : vector<32x256xf32>
    %c224 = arith.constant 224 : index
    %c0_18 = arith.constant 0 : index
    %37 = vector.load %arg6[%c224, %c0_18] : memref<288x256xf32, #tpu.memory_space<vmem>>, vector<32x256xf32>
    tpu.vector_store %arg6[%c224, %c0_18], %36 {strides = array<i32>} : memref<288x256xf32, #tpu.memory_space<vmem>>, vector<32x256xf32>,
    %c239_i32 = arith.constant 239 : i32
    %38 = tpu.dynamic_rotate %1 by %c239_i32 dim 1 : vector<32x256xf32>, i32 -> vector<32x256xf32>
    %c8 = arith.constant 8 : index
    %c0_19 = arith.constant 0 : index
    %39 = vector.load %arg4[%c8, %c0_19] : memref<9x256xf32, #tpu.memory_space<vmem>>, vector<1x256xf32>
    %40 = vector.broadcast %39 : vector<1x256xf32> to vector<32x256xf32>
    %41 = arith.mulf %38, %40 : vector<32x256xf32>
    %c256 = arith.constant 256 : index
    %c0_20 = arith.constant 0 : index
    %42 = vector.load %arg6[%c256, %c0_20] : memref<288x256xf32, #tpu.memory_space<vmem>>, vector<32x256xf32>
    tpu.vector_store %arg6[%c256, %c0_20], %41 {strides = array<i32>} : memref<288x256xf32, #tpu.memory_space<vmem>>, vector<32x256xf32>,
    %c0_21 = arith.constant 0 : index
    %c0_22 = arith.constant 0 : index
    %43 = vector.load %arg2[%c0_21, %c0_22] : memref<32x288xf32, #tpu.memory_space<vmem>>, vector<32x288xf32>
    %c0_23 = arith.constant 0 : index
    %c0_24 = arith.constant 0 : index
    %44 = vector.load %arg6[%c0_23, %c0_24] : memref<288x256xf32, #tpu.memory_space<vmem>>, vector<288x256xf32>
    %cst = arith.constant dense<0.000000e+00> : vector<32x256xf32>
    %45 = tpu.matmul %43, %44, %cst {dimension_numbers = #tpu.dot_dimension_numbers<[1], [0], [0], [1], [0, 0, 1, 1], [], []>} : vector<32x288xf32>, vector<288x256xf32>, vector<32x256xf32> -> vector<32x256xf32>
    %cst_25 = arith.constant 0.000000e+00 : f32
    %46 = vector.broadcast %cst_25 : f32 to vector<32x256xf32>
    %47 = arith.maximumf %45, %46 : vector<32x256xf32>
    %c0_26 = arith.constant 0 : index
    %c0_27 = arith.constant 0 : index
    %48 = vector.load %arg3[%c0_26, %c0_27] : memref<32x32xf32, #tpu.memory_space<vmem>>, vector<32x32xf32>
    %cst_28 = arith.constant dense<0.000000e+00> : vector<32x256xf32>
    %49 = tpu.matmul %48, %47, %cst_28 {dimension_numbers = #tpu.dot_dimension_numbers<[1], [0], [0], [1], [0, 0, 1, 1], [], []>} : vector<32x32xf32>, vector<32x256xf32>, vector<32x256xf32> -> vector<32x256xf32>
    %50 = arith.addf %1, %49 : vector<32x256xf32>
    %c0_29 = arith.constant 0 : index
    %c0_30 = arith.constant 0 : index
    %c0_31 = arith.constant 0 : index
    %51 = vector.load %arg5[%c0_29, %c0_30, %c0_31] : memref<1x32x256xf32, #tpu.memory_space<vmem>>, vector<1x32x256xf32>
    %52 = vector.shape_cast %51 : vector<1x32x256xf32> to vector<32x256xf32>
    %53 = vector.shape_cast %50 : vector<32x256xf32> to vector<1x32x256xf32>
    tpu.vector_store %arg5[%c0_29, %c0_30, %c0_31], %53 {strides = array<i32>} : memref<1x32x256xf32, #tpu.memory_space<vmem>>, vector<1x32x256xf32>,
    return
  }
  func.func @transform_0(%arg0: i32) -> (i32, i32, i32) {
    %c0_i32 = arith.constant 0 : i32
    %c0_i32_0 = arith.constant 0 : i32
    %c0_i32_1 = arith.constant 0 : i32
    return %arg0, %c0_i32, %c0_i32_0 : i32, i32, i32
  }
  func.func @transform_1(%arg0: i32) -> (i32, i32) {
    %c0_i32 = arith.constant 0 : i32
    %c0_i32_0 = arith.constant 0 : i32
    %c0_i32_1 = arith.constant 0 : i32
    return %c0_i32, %c0_i32_0 : i32, i32
  }
  func.func @transform_2(%arg0: i32) -> (i32, i32) {
    %c0_i32 = arith.constant 0 : i32
    %c0_i32_0 = arith.constant 0 : i32
    %c0_i32_1 = arith.constant 0 : i32
    return %c0_i32, %c0_i32_0 : i32, i32
  }
  func.func @transform_3(%arg0: i32) -> (i32, i32) {
    %c0_i32 = arith.constant 0 : i32
    %c0_i32_0 = arith.constant 0 : i32
    %c0_i32_1 = arith.constant 0 : i32
    return %c0_i32, %c0_i32_0 : i32, i32
  }
  func.func @transform_4(%arg0: i32) -> (i32, i32, i32) {
    %c0_i32 = arith.constant 0 : i32
    %c0_i32_0 = arith.constant 0 : i32
    %c0_i32_1 = arith.constant 0 : i32
    return %arg0, %c0_i32, %c0_i32_0 : i32, i32, i32
  }
}

</mosaic_0001>

<llo_original>
// kernel: residual_layer_pallas.1
$region0: #{residual_layer_pallas.1}
  #allocation0 [shape = 'u32[]', space=smem, size = 0x4, offset = 0x4, fixed_abs, tag = 'smem constant byte address 0x4 - core index']
  #allocation1 [shape = 'u32[72,128]{1,0:T(1,128)}', space=vmem, size = 0x9000, scoped, tag = 'internal scratch']
  #allocation2 [shape = 'f32[288,256]{1,0:T(8,128)}', space=vmem, size = 0x48000, scoped, tag = 'scratch operand']
  %s0 = inlined_call_operand.vmem [shape: f32[2,32,256], index: 0, kind: input, shape index: {}]
  %s1 = inlined_call_operand.vmem [shape: f32[32,288], index: 1, kind: input, shape index: {}]
  %s2 = inlined_call_operand.vmem [shape: f32[32,32], index: 2, kind: input, shape index: {}]
  %s3 = inlined_call_operand.vmem [shape: f32[9,256], index: 3, kind: input, shape index: {}]
  %s4 = inlined_call_operand.vmem [shape: f32[2,32,256], index: 4, kind: output, shape index: {}]
  %s5 = sld [smem:[#allocation0]]
  $region49: #{residual_layer_pallas.1} parent=0
    _
  %s7 = ssub.s32 1, %s5
  %s8 = scalar_select 0, %s7, %s5
  loop: start=0, step=1, limit=4
  $region2: #{residual_layer_pallas.1} parent=0 // loop_pre_header
    _
  $region3: #{residual_layer_pallas.1} parent=0 // loop_header
    %s10 = sphi 0, %s14
    %p11 = scmp.ge.s32.totalorder %s10, 4
    %s20 = sphi 0, %s22
    %s23 = sphi 0, %s20
    %s24 = sphi 0, %s23
    %s40 = sphi 0, %s24
    %s44 = sphi 0, %s44
    %s46 = sphi 0, %s44
    %s47 = sphi 0, %s46
    %s61 = sphi 0, %s47
    %s65 = sphi 0, %s65
    %s67 = sphi 0, %s65
    %s68 = sphi 0, %s67
    %s82 = sphi 0, %s68
    %s86 = sphi 0, %s86
    %s88 = sphi 0, %s86
    %s89 = sphi 0, %s88
    %s103 = sphi 0, %s89
    %s109 = sphi 0, %s111
    %s112 = sphi 0, %s109
    %s113 = sphi 0, %s112
    %s129 = sphi 0, %s113
  $region4: #{residual_layer_pallas.1} parent=0 // loop_header_branch
    %13 = sbr.rel (%p11) target = $region8
  $region5: #{residual_layer_pallas.1} parent=0 // loop_body
    %s15 = ssub.s32 %s10, 1
    %s16 = ssub.s32 %s10, 2
    %s17 = sadd.s32 %s10, 1
    %s18 = ssub.s32 %s10, %s17
    %p19 = scmp.eq.s32.totalorder %s18, 0
    %s21 = sadd.s32 %s20, 1
    %s22 = scalar_select %p19, %s20, %s21
    %p25 = pneg %p19
    %p26 = scmp.eq.s32.totalorder %s10, 1
    %p27 = por %p25, %p26
    %p28 = scmp.ne.s32.totalorder %s20, %s23
    %p29 = scmp.eq.s32.totalorder %s10, 0
    %p30 = por %p28, %p29
    %p31 = scmp.ne.s32.totalorder %s20, %s23
    %p32 = scmp.eq.s32.totalorder %s15, 1
    %p33 = por %p31, %p32
    %p34 = scmp.ne.s32.totalorder %s23, %s24
    %p35 = scmp.eq.s32.totalorder %s15, 0
    %p36 = por %p34, %p35
    %p37 = scmp.ne.s32.totalorder %s23, %s24
    %p38 = scmp.eq.s32.totalorder %s16, 1
    %p39 = por %p37, %p38
    %p41 = scmp.ne.s32.totalorder %s24, %s40
    %p42 = scmp.eq.s32.totalorder %s16, 0
    %p43 = por %p41, %p42
    %s45 = sadd.s32 %s44, 1
    %p48 = scmp.eq.s32.totalorder %s10, 1
    %p49 = scmp.ne.s32.totalorder %s44, %s46
    %p50 = scmp.eq.s32.totalorder %s10, 0
    %p51 = por %p49, %p50
    %p52 = scmp.ne.s32.totalorder %s44, %s46
    %p53 = scmp.eq.s32.totalorder %s15, 1
    %p54 = por %p52, %p53
    %p55 = scmp.ne.s32.totalorder %s46, %s47
    %p56 = scmp.eq.s32.totalorder %s15, 0
    %p57 = por %p55, %p56
    %p58 = scmp.ne.s32.totalorder %s46, %s47
    %p59 = scmp.eq.s32.totalorder %s16, 1
    %p60 = por %p58, %p59
    %p62 = scmp.ne.s32.totalorder %s47, %s61
    %p63 = scmp.eq.s32.totalorder %s16, 0
    %p64 = por %p62, %p63
    %s66 = sadd.s32 %s65, 1
    %p69 = scmp.eq.s32.totalorder %s10, 1
    %p70 = scmp.ne.s32.totalorder %s65, %s67
    %p71 = scmp.eq.s32.totalorder %s10, 0
    %p72 = por %p70, %p71
    %p73 = scmp.ne.s32.totalorder %s65, %s67
    %p74 = scmp.eq.s32.totalorder %s15, 1
    %p75 = por %p73, %p74
    %p76 = scmp.ne.s32.totalorder %s67, %s68
    %p77 = scmp.eq.s32.totalorder %s15, 0
    %p78 = por %p76, %p77
    %p79 = scmp.ne.s32.totalorder %s67, %s68
    %p80 = scmp.eq.s32.totalorder %s16, 1
    %p81 = por %p79, %p80
    %p83 = scmp.ne.s32.totalorder %s68, %s82
    %p84 = scmp.eq.s32.totalorder %s16, 0
    %p85 = por %p83, %p84
    %s87 = sadd.s32 %s86, 1
    %p90 = scmp.eq.s32.totalorder %s10, 1
    %p91 = scmp.ne.s32.totalorder %s86, %s88
    %p92 = scmp.eq.s32.totalorder %s10, 0
    %p93 = por %p91, %p92
    %p94 = scmp.ne.s32.totalorder %s86, %s88
    %p95 = scmp.eq.s32.totalorder %s15, 1
    %p96 = por %p94, %p95
    %p97 = scmp.ne.s32.totalorder %s88, %s89
    %p98 = scmp.eq.s32.totalorder %s15, 0
    %p99 = por %p97, %p98
    %p100 = scmp.ne.s32.totalorder %s88, %s89
    %p101 = scmp.eq.s32.totalorder %s16, 1
    %p102 = por %p100, %p101
    %p104 = scmp.ne.s32.totalorder %s89, %s103
    %p105 = scmp.eq.s32.totalorder %s16, 0
    %p106 = por %p104, %p105
    %s107 = ssub.s32 %s10, %s17
    %p108 = scmp.eq.s32.totalorder %s107, 0
    %s110 = sadd.s32 %s109, 1
    %s111 = scalar_select %p108, %s109, %s110
    %p114 = pneg %p108
    %p115 = scmp.eq.s32.totalorder %s10, 1
    %p116 = por %p114, %p115
    %p117 = scmp.ne.s32.totalorder %s109, %s112
    %p118 = scmp.eq.s32.totalorder %s10, 0
    %p119 = por %p117, %p118
    %p120 = scmp.ne.s32.totalorder %s109, %s112
    %p121 = scmp.eq.s32.totalorder %s15, 1
    %p122 = por %p120, %p121
    %p123 = scmp.ne.s32.totalorder %s112, %s113
    %p124 = scmp.eq.s32.totalorder %s15, 0
    %p125 = por %p123, %p124
    %p126 = scmp.ne.s32.totalorder %s112, %s113
    %p127 = scmp.eq.s32.totalorder %s16, 1
    %p128 = por %p126, %p127
    %p130 = scmp.ne.s32.totalorder %s113, %s129
    %p131 = scmp.eq.s32.totalorder %s16, 0
    %p132 = por %p130, %p131
    %p133 = scmp.le.s32.totalorder 1, %s10
    %p134 = scmp.lt.s32.totalorder %s10, 3
    %p135 = pnand %p133, %p134
    %p136 = pneg %p135
    // Predicated region
    $region9: #{residual_layer_pallas.1} parent=5 // pred_check
      _
    $region10: #{residual_layer_pallas.1} parent=5 // pred_check_branch
      %138 = sbr.rel (%p135) target = $region12
    $region11: #{residual_layer_pallas.1} parent=5 // pred_region
      %s139 = ssub.s32 %s10, 1
      // Predicated region
      $region13: #{residual_layer_pallas.1} parent=11 // pred_check
        %p140 = pneg %p57
      $region14: #{residual_layer_pallas.1} parent=11 // pred_check_branch
        %142 = sbr.rel (%p140) target = $region16
      $region15: #{residual_layer_pallas.1} parent=11 // pred_region
        _
      $region16: #{residual_layer_pallas.1} parent=11 // pred_fallthru
        _
      // Predicated region
      $region17: #{residual_layer_pallas.1} parent=11 // pred_check
        %p143 = pneg %p78
      $region18: #{residual_layer_pallas.1} parent=11 // pred_check_branch
        %145 = sbr.rel (%p143) target = $region20
      $region19: #{residual_layer_pallas.1} parent=11 // pred_region
        _
      $region20: #{residual_layer_pallas.1} parent=11 // pred_fallthru
        _
      // Predicated region
      $region21: #{residual_layer_pallas.1} parent=11 // pred_check
        %p146 = pneg %p99
      $region22: #{residual_layer_pallas.1} parent=11 // pred_check_branch
        %148 = sbr.rel (%p146) target = $region24
      $region23: #{residual_layer_pallas.1} parent=11 // pred_region
        _
      $region24: #{residual_layer_pallas.1} parent=11 // pred_fallthru
        _
    $region12: #{residual_layer_pallas.1} parent=5 // pred_fallthru
      _
    %p149 = scmp.lt.s32.totalorder %s10, 2
    // Predicated region
    $region25: #{residual_layer_pallas.1} parent=5 // pred_check
      %p150 = pneg %p149
    $region26: #{residual_layer_pallas.1} parent=5 // pred_check_branch
      %152 = sbr.rel (%p150) target = $region28
    $region27: #{residual_layer_pallas.1} parent=5 // pred_region
      // Predicated region
      $region29: #{residual_layer_pallas.1} parent=27 // pred_check
        %p153 = pneg %p30
      $region30: #{residual_layer_pallas.1} parent=27 // pred_check_branch
        %155 = sbr.rel (%p153) target = $region32
      $region31: #{residual_layer_pallas.1} parent=27 // pred_region
        %p156 = scmp.lt.s32.totalorder %s10, 1
        %s157 = scalar_select %p156, %s10, 1
        %s158 = smul.addr %s157, 8
        %s159 = smul.addr %s158, 8
        %s160 = scalar_lea.vmem %s0, %s159
      $region32: #{residual_layer_pallas.1} parent=27 // pred_fallthru
        _
    $region28: #{residual_layer_pallas.1} parent=5 // pred_fallthru
      _
    %p161 = scmp.le.s32.totalorder 1, %s10
    %p162 = scmp.lt.s32.totalorder %s10, 3
    %p163 = pnand %p161, %p162
    %p164 = pneg %p163
    // Predicated region
    $region33: #{residual_layer_pallas.1} parent=5 // pred_check
      _
    $region34: #{residual_layer_pallas.1} parent=5 // pred_check_branch
      %166 = sbr.rel (%p163) target = $region36
    $region35: #{residual_layer_pallas.1} parent=5 // pred_region
      %s167 = ssub.s32 %s10, 1
      %p168 = scmp.lt.s32.totalorder %s15, 1
      %s169 = scalar_select %p168, %s15, 1
      %s170 = smul.addr %s169, 8
      %s171 = smul.addr %s170, 8
      %s172 = scalar_lea.vmem %s0, %s171
      %p173 = pneg %p36
      %p174 = pneg %p33
      %p175 = pneg %p57
      %p176 = pneg %p54
      %p177 = pneg %p78
      %p178 = pneg %p75
      %p179 = pneg %p99
      %p180 = pneg %p96
      %p181 = pneg %p125
      %p182 = pneg %p122
      %p183 = scmp.lt.s32.totalorder %s15, 1
      %s184 = scalar_select %p183, %s15, 1
      %s185 = smul.addr %s184, 8
      %s186 = smul.addr %s185, 8
      %s187 = scalar_lea.vmem %s4, %s186
      %p188 = scmp.lt.s32.totalorder %s15, 1
      %s189 = scalar_select %p188, %s15, 1
      %s190 = smul.addr %s189, 8
      %s191 = smul.addr %s190, 8
      %s192 = scalar_lea.vmem %s0, %s191
      %p193 = scmp.lt.s32.totalorder %s15, 1
      %s194 = scalar_select %p193, %s15, 1
      %s195 = smul.addr %s194, 8
      %s196 = smul.addr %s195, 8
      %s197 = scalar_lea.vmem %s4, %s196
      %v198 = vld [vmem:[%s192] sm:$0xff]
      %v199 = vld [vmem:[%s192 + $0x8] sm:$0xff]
      %v200 = vld [vmem:[%s192 + $0x10] sm:$0xff]
      %v201 = vld [vmem:[%s192 + $0x18] sm:$0xff]
      %v202 = vld [vmem:[%s192 + $0x20] sm:$0xff]
      %v203 = vld [vmem:[%s192 + $0x28] sm:$0xff]
      %v204 = vld [vmem:[%s192 + $0x30] sm:$0xff]
      %v205 = vld [vmem:[%s192 + $0x38] sm:$0xff]
      %206 = vrot.lane.b32.xlu0 %v198, 17
      %v207 = vpop.permute.xlu0 %206
      %208 = vrot.lane.b32.xlu0 %v200, 17
      %v209 = vpop.permute.xlu0 %208
      %210 = vrot.lane.b32.xlu0 %v202, 17
      %v211 = vpop.permute.xlu0 %210
      %212 = vrot.lane.b32.xlu0 %v204, 17
      %v213 = vpop.permute.xlu0 %212
      %214 = vrot.lane.b32.xlu0 %v199, 17
      %v215 = vpop.permute.xlu0 %214
      %216 = vrot.lane.b32.xlu0 %v201, 17
      %v217 = vpop.permute.xlu0 %216
      %218 = vrot.lane.b32.xlu0 %v203, 17
      %v219 = vpop.permute.xlu0 %218
      %220 = vrot.lane.b32.xlu0 %v205, 17
      %v221 = vpop.permute.xlu0 %220
      %v222 = vlaneseq
      %v223 = vand.u32 %v222, 127
      %vm224 = vcmp.lt.s32.totalorder %v223, 17
      %v225 = vsel %vm224, %v207, %v215
      %v226 = vsel %vm224, %v209, %v217
      %v227 = vsel %vm224, %v211, %v219
      %v228 = vsel %vm224, %v213, %v221
      %v229 = vsel %vm224, %v215, %v207
      %v230 = vsel %vm224, %v217, %v209
      %v231 = vsel %vm224, %v219, %v211
      %v232 = vsel %vm224, %v221, %v213
      %v233 = vld [vmem:[%s3] ss:$8 sm:$0x3]
      %v235 = vperm.slane %v233, 0
      %v236 = vperm.slane %v233, 1
      %v239 = vmul.f32 %v229, %v235
      %v240 = vmul.f32 %v225, %v236
      %v241 = vmul.f32 %v230, %v235
      %v242 = vmul.f32 %v226, %v236
      %v243 = vmul.f32 %v231, %v235
      %v244 = vmul.f32 %v227, %v236
      %v245 = vmul.f32 %v232, %v235
      %v246 = vmul.f32 %v228, %v236
      %247 = vst [vmem:[#allocation2] sm:$0xff] %v239
      %248 = vst [vmem:[#allocation2 + $0x8] sm:$0xff] %v240
      %249 = vst [vmem:[#allocation2 + $0x10] sm:$0xff] %v241
      %250 = vst [vmem:[#allocation2 + $0x18] sm:$0xff] %v242
      %251 = vst [vmem:[#allocation2 + $0x20] sm:$0xff] %v243
      %252 = vst [vmem:[#allocation2 + $0x28] sm:$0xff] %v244
      %253 = vst [vmem:[#allocation2 + $0x30] sm:$0xff] %v245
      %254 = vst [vmem:[#allocation2 + $0x38] sm:$0xff] %v246
      %255 = vrot.lane.b32.xlu0 %v198, 16
      %v256 = vpop.permute.xlu0 %255
      %257 = vrot.lane.b32.xlu0 %v200, 16
      %v258 = vpop.permute.xlu0 %257
      %259 = vrot.lane.b32.xlu0 %v202, 16
      %v260 = vpop.permute.xlu0 %259
      %261 = vrot.lane.b32.xlu0 %v204, 16
      %v262 = vpop.permute.xlu0 %261
      %263 = vrot.lane.b32.xlu0 %v199, 16
      %v264 = vpop.permute.xlu0 %263
      %265 = vrot.lane.b32.xlu0 %v201, 16
      %v266 = vpop.permute.xlu0 %265
      %267 = vrot.lane.b32.xlu0 %v203, 16
      %v268 = vpop.permute.xlu0 %267
      %269 = vrot.lane.b32.xlu0 %v205, 16
      %v270 = vpop.permute.xlu0 %269
      %vm271 = vcmp.lt.s32.totalorder %v223, 16
      %v272 = vsel %vm271, %v256, %v264
      %v273 = vsel %vm271, %v258, %v266
      %v274 = vsel %vm271, %v260, %v268
      %v275 = vsel %vm271, %v262, %v270
      %v276 = vsel %vm271, %v264, %v256
      %v277 = vsel %vm271, %v266, %v258
      %v278 = vsel %vm271, %v268, %v260
      %v279 = vsel %vm271, %v270, %v262
      %s280 = scalar_lea.vmem %s3, 1
      %v281 = vld [vmem:[%s280] ss:$8 sm:$0x3]
      %v283 = vperm.slane %v281, 0
      %v284 = vperm.slane %v281, 1
      %v287 = vmul.f32 %v276, %v283
      %v288 = vmul.f32 %v272, %v284
      %v289 = vmul.f32 %v277, %v283
      %v290 = vmul.f32 %v273, %v284
      %v291 = vmul.f32 %v278, %v283
      %v292 = vmul.f32 %v274, %v284
      %v293 = vmul.f32 %v279, %v283
      %v294 = vmul.f32 %v275, %v284
      %295 = vst [vmem:[#allocation2 + $0x40] sm:$0xff] %v287
      %296 = vst [vmem:[#allocation2 + $0x48] sm:$0xff] %v288
      %297 = vst [vmem:[#allocation2 + $0x50] sm:$0xff] %v289
      %298 = vst [vmem:[#allocation2 + $0x58] sm:$0xff] %v290
      %299 = vst [vmem:[#allocation2 + $0x60] sm:$0xff] %v291
      %300 = vst [vmem:[#allocation2 + $0x68] sm:$0xff] %v292
      %301 = vst [vmem:[#allocation2 + $0x70] sm:$0xff] %v293
      %302 = vst [vmem:[#allocation2 + $0x78] sm:$0xff] %v294
      %303 = vrot.lane.b32.xlu0 %v198, 15
      %v304 = vpop.permute.xlu0 %303
      %305 = vrot.lane.b32.xlu0 %v200, 15
      %v306 = vpop.permute.xlu0 %305
      %307 = vrot.lane.b32.xlu0 %v202, 15
      %v308 = vpop.permute.xlu0 %307
      %309 = vrot.lane.b32.xlu0 %v204, 15
      %v310 = vpop.permute.xlu0 %309
      %311 = vrot.lane.b32.xlu0 %v199, 15
      %v312 = vpop.permute.xlu0 %311
      %313 = vrot.lane.b32.xlu0 %v201, 15
      %v314 = vpop.permute.xlu0 %313
      %315 = vrot.lane.b32.xlu0 %v203, 15
      %v316 = vpop.permute.xlu0 %315
      %317 = vrot.lane.b32.xlu0 %v205, 15
      %v318 = vpop.permute.xlu0 %317
      %vm319 = vcmp.lt.s32.totalorder %v223, 15
      %v320 = vsel %vm319, %v304, %v312
      %v321 = vsel %vm319, %v306, %v314
      %v322 = vsel %vm319, %v308, %v316
      %v323 = vsel %vm319, %v310, %v318
      %v324 = vsel %vm319, %v312, %v304
      %v325 = vsel %vm319, %v314, %v306
      %v326 = vsel %vm319, %v316, %v308
      %v327 = vsel %vm319, %v318, %v310
      %s328 = scalar_lea.vmem %s3, 2
      %v329 = vld [vmem:[%s328] ss:$8 sm:$0x3]
      %v331 = vperm.slane %v329, 0
      %v332 = vperm.slane %v329, 1
      %v335 = vmul.f32 %v324, %v331
      %v336 = vmul.f32 %v320, %v332
      %v337 = vmul.f32 %v325, %v331
      %v338 = vmul.f32 %v321, %v332
      %v339 = vmul.f32 %v326, %v331
      %v340 = vmul.f32 %v322, %v332
      %v341 = vmul.f32 %v327, %v331
      %v342 = vmul.f32 %v323, %v332
      %343 = vst [vmem:[#allocation2 + $0x80] sm:$0xff] %v335
      %344 = vst [vmem:[#allocation2 + $0x88] sm:$0xff] %v336
      %345 = vst [vmem:[#allocation2 + $0x90] sm:$0xff] %v337
      %346 = vst [vmem:[#allocation2 + $0x98] sm:$0xff] %v338
      %347 = vst [vmem:[#allocation2 + $0xa0] sm:$0xff] %v339
      %348 = vst [vmem:[#allocation2 + $0xa8] sm:$0xff] %v340
      %349 = vst [vmem:[#allocation2 + $0xb0] sm:$0xff] %v341
      %350 = vst [vmem:[#allocation2 + $0xb8] sm:$0xff] %v342
      %351 = vrot.lane.b32.xlu0 %v198, 1
      %v352 = vpop.permute.xlu0 %351
      %353 = vrot.lane.b32.xlu0 %v200, 1
      %v354 = vpop.permute.xlu0 %353
      %355 = vrot.lane.b32.xlu0 %v202, 1
      %v356 = vpop.permute.xlu0 %355
      %357 = vrot.lane.b32.xlu0 %v204, 1
      %v358 = vpop.permute.xlu0 %357
      %359 = vrot.lane.b32.xlu0 %v199, 1
      %v360 = vpop.permute.xlu0 %359
      %361 = vrot.lane.b32.xlu0 %v201, 1
      %v362 = vpop.permute.xlu0 %361
      %363 = vrot.lane.b32.xlu0 %v203, 1
      %v364 = vpop.permute.xlu0 %363
      %365 = vrot.lane.b32.xlu0 %v205, 1
      %v366 = vpop.permute.xlu0 %365
      %vm367 = vcmp.lt.s32.totalorder %v223, 1
      %v368 = vsel %vm367, %v352, %v360
      %v369 = vsel %vm367, %v354, %v362
      %v370 = vsel %vm367, %v356, %v364
      %v371 = vsel %vm367, %v358, %v366
      %v372 = vsel %vm367, %v360, %v352
      %v373 = vsel %vm367, %v362, %v354
      %v374 = vsel %vm367, %v364, %v356
      %v375 = vsel %vm367, %v366, %v358
      %s376 = scalar_lea.vmem %s3, 3
      %v377 = vld [vmem:[%s376] ss:$8 sm:$0x3]
      %v379 = vperm.slane %v377, 0
      %v380 = vperm.slane %v377, 1
      %v383 = vmul.f32 %v372, %v379
      %v384 = vmul.f32 %v368, %v380
      %v385 = vmul.f32 %v373, %v379
      %v386 = vmul.f32 %v369, %v380
      %v387 = vmul.f32 %v374, %v379
      %v388 = vmul.f32 %v370, %v380
      %v389 = vmul.f32 %v375, %v379
      %v390 = vmul.f32 %v371, %v380
      %391 = vst [vmem:[#allocation2 + $0xc0] sm:$0xff] %v383
      %392 = vst [vmem:[#allocation2 + $0xc8] sm:$0xff] %v384
      %393 = vst [vmem:[#allocation2 + $0xd0] sm:$0xff] %v385
      %394 = vst [vmem:[#allocation2 + $0xd8] sm:$0xff] %v386
      %395 = vst [vmem:[#allocation2 + $0xe0] sm:$0xff] %v387
      %396 = vst [vmem:[#allocation2 + $0xe8] sm:$0xff] %v388
      %397 = vst [vmem:[#allocation2 + $0xf0] sm:$0xff] %v389
      %398 = vst [vmem:[#allocation2 + $0xf8] sm:$0xff] %v390
      %399 = vst [vmem:[#allocation2 + $0x100] sm:$0xff] %v198
      %400 = vst [vmem:[#allocation2 + $0x108] sm:$0xff] %v199
      %401 = vst [vmem:[#allocation2 + $0x110] sm:$0xff] %v200
      %402 = vst [vmem:[#allocation2 + $0x118] sm:$0xff] %v201
      %403 = vst [vmem:[#allocation2 + $0x120] sm:$0xff] %v202
      %404 = vst [vmem:[#allocation2 + $0x128] sm:$0xff] %v203
      %405 = vst [vmem:[#allocation2 + $0x130] sm:$0xff] %v204
      %406 = vst [vmem:[#allocation2 + $0x138] sm:$0xff] %v205
      %407 = vrot.lane.b32.xlu0 %v198, 127
      %v408 = vpop.permute.xlu0 %407
      %409 = vrot.lane.b32.xlu0 %v200, 127
      %v410 = vpop.permute.xlu0 %409
      %411 = vrot.lane.b32.xlu0 %v202, 127
      %v412 = vpop.permute.xlu0 %411
      %413 = vrot.lane.b32.xlu0 %v204, 127
      %v414 = vpop.permute.xlu0 %413
      %415 = vrot.lane.b32.xlu0 %v199, 127
      %v416 = vpop.permute.xlu0 %415
      %417 = vrot.lane.b32.xlu0 %v201, 127
      %v418 = vpop.permute.xlu0 %417
      %419 = vrot.lane.b32.xlu0 %v203, 127
      %v420 = vpop.permute.xlu0 %419
      %421 = vrot.lane.b32.xlu0 %v205, 127
      %v422 = vpop.permute.xlu0 %421
      %vm423 = vcmp.lt.s32.totalorder %v223, 127
      %v424 = vsel %vm423, %v408, %v416
      %v425 = vsel %vm423, %v410, %v418
      %v426 = vsel %vm423, %v412, %v420
      %v427 = vsel %vm423, %v414, %v422
      %v428 = vsel %vm423, %v416, %v408
      %v429 = vsel %vm423, %v418, %v410
      %v430 = vsel %vm423, %v420, %v412
      %v431 = vsel %vm423, %v422, %v414
      %s432 = scalar_lea.vmem %s3, 5
      %v433 = vld [vmem:[%s432] ss:$8 sm:$0x3]
      %v435 = vperm.slane %v433, 0
      %v436 = vperm.slane %v433, 1
      %v439 = vmul.f32 %v424, %v435
      %v440 = vmul.f32 %v428, %v436
      %v441 = vmul.f32 %v425, %v435
      %v442 = vmul.f32 %v429, %v436
      %v443 = vmul.f32 %v426, %v435
      %v444 = vmul.f32 %v430, %v436
      %v445 = vmul.f32 %v427, %v435
      %v446 = vmul.f32 %v431, %v436
      %447 = vst [vmem:[#allocation2 + $0x140] sm:$0xff] %v439
      %448 = vst [vmem:[#allocation2 + $0x148] sm:$0xff] %v440
      %449 = vst [vmem:[#allocation2 + $0x150] sm:$0xff] %v441
      %450 = vst [vmem:[#allocation2 + $0x158] sm:$0xff] %v442
      %451 = vst [vmem:[#allocation2 + $0x160] sm:$0xff] %v443
      %452 = vst [vmem:[#allocation2 + $0x168] sm:$0xff] %v444
      %453 = vst [vmem:[#allocation2 + $0x170] sm:$0xff] %v445
      %454 = vst [vmem:[#allocation2 + $0x178] sm:$0xff] %v446
      %455 = vrot.lane.b32.xlu0 %v198, 113
      %v456 = vpop.permute.xlu0 %455
      %457 = vrot.lane.b32.xlu0 %v200, 113
      %v458 = vpop.permute.xlu0 %457
      %459 = vrot.lane.b32.xlu0 %v202, 113
      %v460 = vpop.permute.xlu0 %459
      %461 = vrot.lane.b32.xlu0 %v204, 113
      %v462 = vpop.permute.xlu0 %461
      %463 = vrot.lane.b32.xlu0 %v199, 113
      %v464 = vpop.permute.xlu0 %463
      %465 = vrot.lane.b32.xlu0 %v201, 113
      %v466 = vpop.permute.xlu0 %465
      %467 = vrot.lane.b32.xlu0 %v203, 113
      %v468 = vpop.permute.xlu0 %467
      %469 = vrot.lane.b32.xlu0 %v205, 113
      %v470 = vpop.permute.xlu0 %469
      %vm471 = vcmp.lt.s32.totalorder %v223, 113
      %v472 = vsel %vm471, %v456, %v464
      %v473 = vsel %vm471, %v458, %v466
      %v474 = vsel %vm471, %v460, %v468
      %v475 = vsel %vm471, %v462, %v470
      %v476 = vsel %vm471, %v464, %v456
      %v477 = vsel %vm471, %v466, %v458
      %v478 = vsel %vm471, %v468, %v460
      %v479 = vsel %vm471, %v470, %v462
      %s480 = scalar_lea.vmem %s3, 6
      %v481 = vld [vmem:[%s480] ss:$8 sm:$0x3]
      %v483 = vperm.slane %v481, 0
      %v484 = vperm.slane %v481, 1
      %v487 = vmul.f32 %v472, %v483
      %v488 = vmul.f32 %v476, %v484
      %v489 = vmul.f32 %v473, %v483
      %v490 = vmul.f32 %v477, %v484
      %v491 = vmul.f32 %v474, %v483
      %v492 = vmul.f32 %v478, %v484
      %v493 = vmul.f32 %v475, %v483
      %v494 = vmul.f32 %v479, %v484
      %495 = vst [vmem:[#allocation2 + $0x180] sm:$0xff] %v487
      %496 = vst [vmem:[#allocation2 + $0x188] sm:$0xff] %v488
      %497 = vst [vmem:[#allocation2 + $0x190] sm:$0xff] %v489
      %498 = vst [vmem:[#allocation2 + $0x198] sm:$0xff] %v490
      %499 = vst [vmem:[#allocation2 + $0x1a0] sm:$0xff] %v491
      %500 = vst [vmem:[#allocation2 + $0x1a8] sm:$0xff] %v492
      %501 = vst [vmem:[#allocation2 + $0x1b0] sm:$0xff] %v493
      %502 = vst [vmem:[#allocation2 + $0x1b8] sm:$0xff] %v494
      %503 = vrot.lane.b32.xlu0 %v198, 112
      %v504 = vpop.permute.xlu0 %503
      %505 = vrot.lane.b32.xlu0 %v200, 112
      %v506 = vpop.permute.xlu0 %505
      %507 = vrot.lane.b32.xlu0 %v202, 112
      %v508 = vpop.permute.xlu0 %507
      %509 = vrot.lane.b32.xlu0 %v204, 112
      %v510 = vpop.permute.xlu0 %509
      %511 = vrot.lane.b32.xlu0 %v199, 112
      %v512 = vpop.permute.xlu0 %511
      %513 = vrot.lane.b32.xlu0 %v201, 112
      %v514 = vpop.permute.xlu0 %513
      %515 = vrot.lane.b32.xlu0 %v203, 112
      %v516 = vpop.permute.xlu0 %515
      %517 = vrot.lane.b32.xlu0 %v205, 112
      %v518 = vpop.permute.xlu0 %517
      %vm519 = vcmp.lt.s32.totalorder %v223, 112
      %v520 = vsel %vm519, %v504, %v512
      %v521 = vsel %vm519, %v506, %v514
      %v522 = vsel %vm519, %v508, %v516
      %v523 = vsel %vm519, %v510, %v518
      %v524 = vsel %vm519, %v512, %v504
      %v525 = vsel %vm519, %v514, %v506
      %v526 = vsel %vm519, %v516, %v508
      %v527 = vsel %vm519, %v518, %v510
      %s528 = scalar_lea.vmem %s3, 7
      %v529 = vld [vmem:[%s528] ss:$8 sm:$0x3]
      %v531 = vperm.slane %v529, 0
      %v532 = vperm.slane %v529, 1
      %v535 = vmul.f32 %v520, %v531
      %v536 = vmul.f32 %v524, %v532
      %v537 = vmul.f32 %v521, %v531
      %v538 = vmul.f32 %v525, %v532
      %v539 = vmul.f32 %v522, %v531
      %v540 = vmul.f32 %v526, %v532
      %v541 = vmul.f32 %v523, %v531
      %v542 = vmul.f32 %v527, %v532
      %543 = vst [vmem:[#allocation2 + $0x1c0] sm:$0xff] %v535
      %544 = vst [vmem:[#allocation2 + $0x1c8] sm:$0xff] %v536
      %545 = vst [vmem:[#allocation2 + $0x1d0] sm:$0xff] %v537
      %546 = vst [vmem:[#allocation2 + $0x1d8] sm:$0xff] %v538
      %547 = vst [vmem:[#allocation2 + $0x1e0] sm:$0xff] %v539
      %548 = vst [vmem:[#allocation2 + $0x1e8] sm:$0xff] %v540
      %549 = vst [vmem:[#allocation2 + $0x1f0] sm:$0xff] %v541
      %550 = vst [vmem:[#allocation2 + $0x1f8] sm:$0xff] %v542
      %551 = vrot.lane.b32.xlu0 %v198, 111
      %v552 = vpop.permute.xlu0 %551
      %553 = vrot.lane.b32.xlu0 %v200, 111
      %v554 = vpop.permute.xlu0 %553
      %555 = vrot.lane.b32.xlu0 %v202, 111
      %v556 = vpop.permute.xlu0 %555
      %557 = vrot.lane.b32.xlu0 %v204, 111
      %v558 = vpop.permute.xlu0 %557
      %559 = vrot.lane.b32.xlu0 %v199, 111
      %v560 = vpop.permute.xlu0 %559
      %561 = vrot.lane.b32.xlu0 %v201, 111
      %v562 = vpop.permute.xlu0 %561
      %563 = vrot.lane.b32.xlu0 %v203, 111
      %v564 = vpop.permute.xlu0 %563
      %565 = vrot.lane.b32.xlu0 %v205, 111
      %v566 = vpop.permute.xlu0 %565
      %vm567 = vcmp.lt.s32.totalorder %v223, 111
      %v568 = vsel %vm567, %v552, %v560
      %v569 = vsel %vm567, %v554, %v562
      %v570 = vsel %vm567, %v556, %v564
      %v571 = vsel %vm567, %v558, %v566
      %v572 = vsel %vm567, %v560, %v552
      %v573 = vsel %vm567, %v562, %v554
      %v574 = vsel %vm567, %v564, %v556
      %v575 = vsel %vm567, %v566, %v558
      %s576 = scalar_lea.vmem %s3, 16
      %v577 = vld [vmem:[%s576] ss:$8 sm:$0x3]
      %v579 = vperm.slane %v577, 0
      %v580 = vperm.slane %v577, 1
      %v583 = vmul.f32 %v568, %v579
      %v584 = vmul.f32 %v572, %v580
      %v585 = vmul.f32 %v569, %v579
      %v586 = vmul.f32 %v573, %v580
      %v587 = vmul.f32 %v570, %v579
      %v588 = vmul.f32 %v574, %v580
      %v589 = vmul.f32 %v571, %v579
      %v590 = vmul.f32 %v575, %v580
      %591 = vst [vmem:[#allocation2 + $0x200] sm:$0xff] %v583
      %592 = vst [vmem:[#allocation2 + $0x208] sm:$0xff] %v584
      %593 = vst [vmem:[#allocation2 + $0x210] sm:$0xff] %v585
      %594 = vst [vmem:[#allocation2 + $0x218] sm:$0xff] %v586
      %595 = vst [vmem:[#allocation2 + $0x220] sm:$0xff] %v587
      %596 = vst [vmem:[#allocation2 + $0x228] sm:$0xff] %v588
      %597 = vst [vmem:[#allocation2 + $0x230] sm:$0xff] %v589
      %598 = vst [vmem:[#allocation2 + $0x238] sm:$0xff] %v590
      %v599 = vld [vmem:[%s1] sm:$0xff]
      %v600 = vld [vmem:[%s1 + $0x8] sm:$0xff]
      %v601 = vld [vmem:[%s1 + $0x10] sm:$0xff]
      %v602 = vld [vmem:[%s1 + $0x18] sm:$0xff]
      %v603 = vld [vmem:[%s1 + $0x20] sm:$0xff]
      %v604 = vld [vmem:[%s1 + $0x28] sm:$0xff]
      %v605 = vld [vmem:[%s1 + $0x30] sm:$0xff]
      %v606 = vld [vmem:[%s1 + $0x38] sm:$0xff]
      %v607 = vld [vmem:[%s1 + $0x40] sm:$0xff]
      %v608 = vld [vmem:[%s1 + $0x48] sm:$0xff]
      %v609 = vld [vmem:[%s1 + $0x50] sm:$0xff]
      %v610 = vld [vmem:[%s1 + $0x58] sm:$0xff]
      %v611 = vld [vmem:[#allocation2] sm:$0xff]
      %v612 = vld [vmem:[#allocation2 + $0x8] sm:$0xff]
      %v613 = vld [vmem:[#allocation2 + $0x10] sm:$0xff]
      %v614 = vld [vmem:[#allocation2 + $0x18] sm:$0xff]
      %v615 = vld [vmem:[#allocation2 + $0x20] sm:$0xff]
      %v616 = vld [vmem:[#allocation2 + $0x28] sm:$0xff]
      %v617 = vld [vmem:[#allocation2 + $0x30] sm:$0xff]
      %v618 = vld [vmem:[#allocation2 + $0x38] sm:$0xff]
      %v619 = vld [vmem:[#allocation2 + $0x40] sm:$0xff]
      %v620 = vld [vmem:[#allocation2 + $0x48] sm:$0xff]
      %v621 = vld [vmem:[#allocation2 + $0x50] sm:$0xff]
      %v622 = vld [vmem:[#allocation2 + $0x58] sm:$0xff]
      %v623 = vld [vmem:[#allocation2 + $0x60] sm:$0xff]
      %v624 = vld [vmem:[#allocation2 + $0x68] sm:$0xff]
      %v625 = vld [vmem:[#allocation2 + $0x70] sm:$0xff]
      %v626 = vld [vmem:[#allocation2 + $0x78] sm:$0xff]
      %v627 = vld [vmem:[#allocation2 + $0x80] sm:$0xff]
      %v628 = vld [vmem:[#allocation2 + $0x88] sm:$0xff]
      %v629 = vld [vmem:[#allocation2 + $0x90] sm:$0xff]
      %v630 = vld [vmem:[#allocation2 + $0x98] sm:$0xff]
      %v631 = vld [vmem:[#allocation2 + $0xa0] sm:$0xff]
      %v632 = vld [vmem:[#allocation2 + $0xa8] sm:$0xff]
      %v633 = vld [vmem:[#allocation2 + $0xb0] sm:$0xff]
      %v634 = vld [vmem:[#allocation2 + $0xb8] sm:$0xff]
      %v635 = vld [vmem:[#allocation2 + $0xc0] sm:$0xff]
      %v636 = vld [vmem:[#allocation2 + $0xc8] sm:$0xff]
      %v637 = vld [vmem:[#allocation2 + $0xd0] sm:$0xff]
      %v638 = vld [vmem:[#allocation2 + $0xd8] sm:$0xff]
      %v639 = vld [vmem:[#allocation2 + $0xe0] sm:$0xff]
      %v640 = vld [vmem:[#allocation2 + $0xe8] sm:$0xff]
      %v641 = vld [vmem:[#allocation2 + $0xf0] sm:$0xff]
      %v642 = vld [vmem:[#allocation2 + $0xf8] sm:$0xff]
      %v643 = vld [vmem:[#allocation2 + $0x100] sm:$0xff]
      %v644 = vld [vmem:[#allocation2 + $0x108] sm:$0xff]
      %v645 = vld [vmem:[#allocation2 + $0x110] sm:$0xff]
      %v646 = vld [vmem:[#allocation2 + $0x118] sm:$0xff]
      %v647 = vld [vmem:[#allocation2 + $0x120] sm:$0xff]
      %v648 = vld [vmem:[#allocation2 + $0x128] sm:$0xff]
      %v649 = vld [vmem:[#allocation2 + $0x130] sm:$0xff]
      %v650 = vld [vmem:[#allocation2 + $0x138] sm:$0xff]
      %v651 = vld [vmem:[#allocation2 + $0x140] sm:$0xff]
      %v652 = vld [vmem:[#allocation2 + $0x148] sm:$0xff]
      %v653 = vld [vmem:[#allocation2 + $0x150] sm:$0xff]
      %v654 = vld [vmem:[#allocation2 + $0x158] sm:$0xff]
      %v655 = vld [vmem:[#allocation2 + $0x160] sm:$0xff]
      %v656 = vld [vmem:[#allocation2 + $0x168] sm:$0xff]
      %v657 = vld [vmem:[#allocation2 + $0x170] sm:$0xff]
      %v658 = vld [vmem:[#allocation2 + $0x178] sm:$0xff]
      %v659 = vld [vmem:[#allocation2 + $0x180] sm:$0xff]
      %v660 = vld [vmem:[#allocation2 + $0x188] sm:$0xff]
      %v661 = vld [vmem:[#allocation2 + $0x190] sm:$0xff]
      %v662 = vld [vmem:[#allocation2 + $0x198] sm:$0xff]
      %v663 = vld [vmem:[#allocation2 + $0x1a0] sm:$0xff]
      %v664 = vld [vmem:[#allocation2 + $0x1a8] sm:$0xff]
      %v665 = vld [vmem:[#allocation2 + $0x1b0] sm:$0xff]
      %v666 = vld [vmem:[#allocation2 + $0x1b8] sm:$0xff]
      %v667 = vld [vmem:[#allocation2 + $0x1c0] sm:$0xff]
      %v668 = vld [vmem:[#allocation2 + $0x1c8] sm:$0xff]
      %v669 = vld [vmem:[#allocation2 + $0x1d0] sm:$0xff]
      %v670 = vld [vmem:[#allocation2 + $0x1d8] sm:$0xff]
      %v671 = vld [vmem:[#allocation2 + $0x1e0] sm:$0xff]
      %v672 = vld [vmem:[#allocation2 + $0x1e8] sm:$0xff]
      %v673 = vld [vmem:[#allocation2 + $0x1f0] sm:$0xff]
      %v674 = vld [vmem:[#allocation2 + $0x1f8] sm:$0xff]
      %v675 = vld [vmem:[#allocation2 + $0x200] sm:$0xff]
      %v676 = vld [vmem:[#allocation2 + $0x208] sm:$0xff]
      %v677 = vld [vmem:[#allocation2 + $0x210] sm:$0xff]
      %v678 = vld [vmem:[#allocation2 + $0x218] sm:$0xff]
      %v679 = vld [vmem:[#allocation2 + $0x220] sm:$0xff]
      %v680 = vld [vmem:[#allocation2 + $0x228] sm:$0xff]
      %v681 = vld [vmem:[#allocation2 + $0x230] sm:$0xff]
      %v682 = vld [vmem:[#allocation2 + $0x238] sm:$0xff]
      %vm683 = vcmask 261120
      %v685 = vsel %vm683, %v601, 0
      %v688 = vsel %vm683, %v604, 0
      %v691 = vsel %vm683, %v607, 0
      %v694 = vsel %vm683, %v610, 0
      %696 = vmatpush.msra.mxu0 %v641
      %697 = vmatpush.msra.mxu0 %v639
      %698 = vmatpush.msra.mxu0 %v637
      %699 = vmatpush.msra.mxu0 %v635
      %700 = vmatpush.msra.mxu0 %v633
      %701 = vmatpush.msra.mxu0 %v631
      %702 = vmatpush.msra.mxu0 %v629
      %703 = vmatpush.msra.mxu0 %v627
      %704 = vmatpush.msra.mxu0 %v625
      %705 = vmatpush.msra.mxu0 %v623
      %706 = vmatpush.msra.mxu0 %v621
      %707 = vmatpush.msra.mxu0 %v619
      %708 = vmatpush.msra.mxu0 %v617
      %709 = vmatpush.msra.mxu0 %v615
      %710 = vmatpush.msra.mxu0 %v613
      %711 = vmatpush.msra.mxu0 %v611
      %712 = vmatmul.f32.gmra.mxu0 %v599
      %v713 = vpop.f32.mrf.mxu0
      %v714 = vadd.f32 0.0, %v713
      %715 = vmatmul.f32.gmra.mxu0 %v602
      %v716 = vpop.f32.mrf.mxu0
      %v717 = vadd.f32 0.0, %v716
      %718 = vmatmul.f32.gmra.mxu0 %v605
      %v719 = vpop.f32.mrf.mxu0
      %v720 = vadd.f32 0.0, %v719
      %721 = vmatmul.f32.gmra.mxu0 %v608
      %v722 = vpop.f32.mrf.mxu0
      %v723 = vadd.f32 0.0, %v722
      %724 = vdwg.mxu0
      %725 = vmatpush.msra.mxu0 %v673
      %726 = vmatpush.msra.mxu0 %v671
      %727 = vmatpush.msra.mxu0 %v669
      %728 = vmatpush.msra.mxu0 %v667
      %729 = vmatpush.msra.mxu0 %v665
      %730 = vmatpush.msra.mxu0 %v663
      %731 = vmatpush.msra.mxu0 %v661
      %732 = vmatpush.msra.mxu0 %v659
      %733 = vmatpush.msra.mxu0 %v657
      %734 = vmatpush.msra.mxu0 %v655
      %735 = vmatpush.msra.mxu0 %v653
      %736 = vmatpush.msra.mxu0 %v651
      %737 = vmatpush.msra.mxu0 %v649
      %738 = vmatpush.msra.mxu0 %v647
      %739 = vmatpush.msra.mxu0 %v645
      %740 = vmatpush.msra.mxu0 %v643
      %741 = vmatmul.f32.gmra.mxu0 %v600
      %v742 = vpop.f32.mrf.mxu0
      %v743 = vadd.f32 %v714, %v742
      %744 = vmatmul.f32.gmra.mxu0 %v603
      %v745 = vpop.f32.mrf.mxu0
      %v746 = vadd.f32 %v717, %v745
      %747 = vmatmul.f32.gmra.mxu0 %v606
      %v748 = vpop.f32.mrf.mxu0
      %v749 = vadd.f32 %v720, %v748
      %750 = vmatmul.f32.gmra.mxu0 %v609
      %v751 = vpop.f32.mrf.mxu0
      %v752 = vadd.f32 %v723, %v751
      %753 = vdwg.mxu0
      %754 = vmatpush.msra.mxu0 0.0
      %755 = vmatpush.msra.mxu0 0.0
      %756 = vmatpush.msra.mxu0 0.0
      %757 = vmatpush.msra.mxu0 0.0
      %758 = vmatpush.msra.mxu0 0.0
      %759 = vmatpush.msra.mxu0 0.0
      %760 = vmatpush.msra.mxu0 0.0
      %761 = vmatpush.msra.mxu0 0.0
      %762 = vmatpush.msra.mxu0 0.0
      %763 = vmatpush.msra.mxu0 0.0
      %764 = vmatpush.msra.mxu0 0.0
      %765 = vmatpush.msra.mxu0 0.0
      %766 = vmatpush.msra.mxu0 %v681
      %767 = vmatpush.msra.mxu0 %v679
      %768 = vmatpush.msra.mxu0 %v677
      %769 = vmatpush.msra.mxu0 %v675
      %770 = vmatmul.f32.gmra.mxu0 %v685
      %v771 = vpop.f32.mrf.mxu0
      %v772 = vadd.f32 %v743, %v771
      %773 = vmatmul.f32.gmra.mxu0 %v688
      %v774 = vpop.f32.mrf.mxu0
      %v775 = vadd.f32 %v746, %v774
      %776 = vmatmul.f32.gmra.mxu0 %v691
      %v777 = vpop.f32.mrf.mxu0
      %v778 = vadd.f32 %v749, %v777
      %779 = vmatmul.f32.gmra.mxu0 %v694
      %v780 = vpop.f32.mrf.mxu0
      %v781 = vadd.f32 %v752, %v780
      %782 = vdwg.mxu0
      %783 = vmatpush.msra.mxu0 %v642
      %784 = vmatpush.msra.mxu0 %v640
      %785 = vmatpush.msra.mxu0 %v638
      %786 = vmatpush.msra.mxu0 %v636
      %787 = vmatpush.msra.mxu0 %v634
      %788 = vmatpush.msra.mxu0 %v632
      %789 = vmatpush.msra.mxu0 %v630
      %790 = vmatpush.msra.mxu0 %v628
      %791 = vmatpush.msra.mxu0 %v626
      %792 = vmatpush.msra.mxu0 %v624
      %793 = vmatpush.msra.mxu0 %v622
      %794 = vmatpush.msra.mxu0 %v620
      %795 = vmatpush.msra.mxu0 %v618
      %796 = vmatpush.msra.mxu0 %v616
      %797 = vmatpush.msra.mxu0 %v614
      %798 = vmatpush.msra.mxu0 %v612
      %799 = vmatmul.f32.gmra.mxu0 %v599
      %v800 = vpop.f32.mrf.mxu0
      %v801 = vadd.f32 0.0, %v800
      %802 = vmatmul.f32.gmra.mxu0 %v602
      %v803 = vpop.f32.mrf.mxu0
      %v804 = vadd.f32 0.0, %v803
      %805 = vmatmul.f32.gmra.mxu0 %v605
      %v806 = vpop.f32.mrf.mxu0
      %v807 = vadd.f32 0.0, %v806
      %808 = vmatmul.f32.gmra.mxu0 %v608
      %v809 = vpop.f32.mrf.mxu0
      %v810 = vadd.f32 0.0, %v809
      %811 = vdwg.mxu0
      %812 = vmatpush.msra.mxu0 %v674
      %813 = vmatpush.msra.mxu0 %v672
      %814 = vmatpush.msra.mxu0 %v670
      %815 = vmatpush.msra.mxu0 %v668
      %816 = vmatpush.msra.mxu0 %v666
      %817 = vmatpush.msra.mxu0 %v664
      %818 = vmatpush.msra.mxu0 %v662
      %819 = vmatpush.msra.mxu0 %v660
      %820 = vmatpush.msra.mxu0 %v658
      %821 = vmatpush.msra.mxu0 %v656
      %822 = vmatpush.msra.mxu0 %v654
      %823 = vmatpush.msra.mxu0 %v652
      %824 = vmatpush.msra.mxu0 %v650
      %825 = vmatpush.msra.mxu0 %v648
      %826 = vmatpush.msra.mxu0 %v646
      %827 = vmatpush.msra.mxu0 %v644
      %828 = vmatmul.f32.gmra.mxu0 %v600
      %v829 = vpop.f32.mrf.mxu0
      %v830 = vadd.f32 %v801, %v829
      %831 = vmatmul.f32.gmra.mxu0 %v603
      %v832 = vpop.f32.mrf.mxu0
      %v833 = vadd.f32 %v804, %v832
      %834 = vmatmul.f32.gmra.mxu0 %v606
      %v835 = vpop.f32.mrf.mxu0
      %v836 = vadd.f32 %v807, %v835
      %837 = vmatmul.f32.gmra.mxu0 %v609
      %v838 = vpop.f32.mrf.mxu0
      %v839 = vadd.f32 %v810, %v838
      %840 = vdwg.mxu0
      %841 = vmatpush.msra.mxu0 0.0
      %842 = vmatpush.msra.mxu0 0.0
      %843 = vmatpush.msra.mxu0 0.0
      %844 = vmatpush.msra.mxu0 0.0
      %845 = vmatpush.msra.mxu0 0.0
      %846 = vmatpush.msra.mxu0 0.0
      %847 = vmatpush.msra.mxu0 0.0
      %848 = vmatpush.msra.mxu0 0.0
      %849 = vmatpush.msra.mxu0 0.0
      %850 = vmatpush.msra.mxu0 0.0
      %851 = vmatpush.msra.mxu0 0.0
      %852 = vmatpush.msra.mxu0 0.0
      %853 = vmatpush.msra.mxu0 %v682
      %854 = vmatpush.msra.mxu0 %v680
      %855 = vmatpush.msra.mxu0 %v678
      %856 = vmatpush.msra.mxu0 %v676
      %857 = vmatmul.f32.gmra.mxu0 %v685
      %v858 = vpop.f32.mrf.mxu0
      %v859 = vadd.f32 %v830, %v858
      %860 = vmatmul.f32.gmra.mxu0 %v688
      %v861 = vpop.f32.mrf.mxu0
      %v862 = vadd.f32 %v833, %v861
      %863 = vmatmul.f32.gmra.mxu0 %v691
      %v864 = vpop.f32.mrf.mxu0
      %v865 = vadd.f32 %v836, %v864
      %866 = vmatmul.f32.gmra.mxu0 %v694
      %v867 = vpop.f32.mrf.mxu0
      %v868 = vadd.f32 %v839, %v867
      %869 = vdwg.mxu0
      %v870 = vmax.f32 %v772, 0.0
      %v871 = vmax.f32 %v859, 0.0
      %v872 = vmax.f32 %v775, 0.0
      %v873 = vmax.f32 %v862, 0.0
      %v874 = vmax.f32 %v778, 0.0
      %v875 = vmax.f32 %v865, 0.0
      %v876 = vmax.f32 %v781, 0.0
      %v877 = vmax.f32 %v868, 0.0
      %v878 = vld [vmem:[%s2] sm:$0xff]
      %v879 = vld [vmem:[%s2 + $0x8] sm:$0xff]
      %v880 = vld [vmem:[%s2 + $0x10] sm:$0xff]
      %v881 = vld [vmem:[%s2 + $0x18] sm:$0xff]
      %v883 = vsel %vm683, %v878, 0
      %v886 = vsel %vm683, %v879, 0
      %v889 = vsel %vm683, %v880, 0
      %v892 = vsel %vm683, %v881, 0
      %894 = vmatpush.msra.mxu0 0.0
      %895 = vmatpush.msra.mxu0 0.0
      %896 = vmatpush.msra.mxu0 0.0
      %897 = vmatpush.msra.mxu0 0.0
      %898 = vmatpush.msra.mxu0 0.0
      %899 = vmatpush.msra.mxu0 0.0
      %900 = vmatpush.msra.mxu0 0.0
      %901 = vmatpush.msra.mxu0 0.0
      %902 = vmatpush.msra.mxu0 0.0
      %903 = vmatpush.msra.mxu0 0.0
      %904 = vmatpush.msra.mxu0 0.0
      %905 = vmatpush.msra.mxu0 0.0
      %906 = vmatpush.msra.mxu0 %v876
      %907 = vmatpush.msra.mxu0 %v874
      %908 = vmatpush.msra.mxu0 %v872
      %909 = vmatpush.msra.mxu0 %v870
      %910 = vmatmul.f32.gmra.mxu0 %v883
      %v911 = vpop.f32.mrf.mxu0
      %v912 = vadd.f32 0.0, %v911
      %913 = vmatmul.f32.gmra.mxu0 %v886
      %v914 = vpop.f32.mrf.mxu0
      %v915 = vadd.f32 0.0, %v914
      %916 = vmatmul.f32.gmra.mxu0 %v889
      %v917 = vpop.f32.mrf.mxu0
      %v918 = vadd.f32 0.0, %v917
      %919 = vmatmul.f32.gmra.mxu0 %v892
      %v920 = vpop.f32.mrf.mxu0
      %v921 = vadd.f32 0.0, %v920
      %922 = vdwg.mxu0
      %923 = vmatpush.msra.mxu0 0.0
      %924 = vmatpush.msra.mxu0 0.0
      %925 = vmatpush.msra.mxu0 0.0
      %926 = vmatpush.msra.mxu0 0.0
      %927 = vmatpush.msra.mxu0 0.0
      %928 = vmatpush.msra.mxu0 0.0
      %929 = vmatpush.msra.mxu0 0.0
      %930 = vmatpush.msra.mxu0 0.0
      %931 = vmatpush.msra.mxu0 0.0
      %932 = vmatpush.msra.mxu0 0.0
      %933 = vmatpush.msra.mxu0 0.0
      %934 = vmatpush.msra.mxu0 0.0
      %935 = vmatpush.msra.mxu0 %v877
      %936 = vmatpush.msra.mxu0 %v875
      %937 = vmatpush.msra.mxu0 %v873
      %938 = vmatpush.msra.mxu0 %v871
      %939 = vmatmul.f32.gmra.mxu0 %v883
      %v940 = vpop.f32.mrf.mxu0
      %v941 = vadd.f32 0.0, %v940
      %942 = vmatmul.f32.gmra.mxu0 %v886
      %v943 = vpop.f32.mrf.mxu0
      %v944 = vadd.f32 0.0, %v943
      %945 = vmatmul.f32.gmra.mxu0 %v889
      %v946 = vpop.f32.mrf.mxu0
      %v947 = vadd.f32 0.0, %v946
      %948 = vmatmul.f32.gmra.mxu0 %v892
      %v949 = vpop.f32.mrf.mxu0
      %v950 = vadd.f32 0.0, %v949
      %951 = vdwg.mxu0
      %v952 = vadd.f32 %v198, %v912
      %v953 = vadd.f32 %v199, %v941
      %v954 = vadd.f32 %v200, %v915
      %v955 = vadd.f32 %v201, %v944
      %v956 = vadd.f32 %v202, %v918
      %v957 = vadd.f32 %v203, %v947
      %v958 = vadd.f32 %v204, %v921
      %v959 = vadd.f32 %v205, %v950
      %960 = vst [vmem:[%s197] sm:$0xff] %v952
      %961 = vst [vmem:[%s197 + $0x8] sm:$0xff] %v953
      %962 = vst [vmem:[%s197 + $0x10] sm:$0xff] %v954
      %963 = vst [vmem:[%s197 + $0x18] sm:$0xff] %v955
      %964 = vst [vmem:[%s197 + $0x20] sm:$0xff] %v956
      %965 = vst [vmem:[%s197 + $0x28] sm:$0xff] %v957
      %966 = vst [vmem:[%s197 + $0x30] sm:$0xff] %v958
      %967 = vst [vmem:[%s197 + $0x38] sm:$0xff] %v959
      %p968 = scmp.lt.s32.totalorder %s15, 1
      %s969 = scalar_select %p968, %s15, 1
      %s970 = smul.addr %s969, 8
      %s971 = smul.addr %s970, 8
      %s972 = scalar_lea.vmem %s4, %s971
      // Predicated region
      $region37: #{residual_layer_pallas.1} parent=35 // pred_check
        %p973 = pneg %p122
      $region38: #{residual_layer_pallas.1} parent=35 // pred_check_branch
        %975 = sbr.rel (%p973) target = $region40
      $region39: #{residual_layer_pallas.1} parent=35 // pred_region
        _
      $region40: #{residual_layer_pallas.1} parent=35 // pred_fallthru
        _
    $region36: #{residual_layer_pallas.1} parent=5 // pred_fallthru
      _
    %p976 = scmp.le.s32.totalorder 2, %s10
    // Predicated region
    $region41: #{residual_layer_pallas.1} parent=5 // pred_check
      %p977 = pneg %p976
    $region42: #{residual_layer_pallas.1} parent=5 // pred_check_branch
      %979 = sbr.rel (%p977) target = $region44
    $region43: #{residual_layer_pallas.1} parent=5 // pred_region
      %s980 = ssub.s32 %s10, 2
      // Predicated region
      $region45: #{residual_layer_pallas.1} parent=43 // pred_check
        %p981 = pneg %p128
      $region46: #{residual_layer_pallas.1} parent=43 // pred_check_branch
        %983 = sbr.rel (%p981) target = $region48
      $region47: #{residual_layer_pallas.1} parent=43 // pred_region
        %p984 = scmp.lt.s32.totalorder %s16, 1
        %s985 = scalar_select %p984, %s16, 1
        %s986 = smul.addr %s985, 8
        %s987 = smul.addr %s986, 8
        %s988 = scalar_lea.vmem %s4, %s987
      $region48: #{residual_layer_pallas.1} parent=43 // pred_fallthru
        _
    $region44: #{residual_layer_pallas.1} parent=5 // pred_fallthru
      _
  $region6: #{residual_layer_pallas.1} parent=0 // loop_footer
    %s14 = sadd.s32 1, %s10
  $region7: #{residual_layer_pallas.1} parent=0 // loop_footer_branch
    %9 = sbr.rel target = $region3
  $region8: #{residual_layer_pallas.1} parent=0 // loop_exit
    _

</llo_original>
